<compile_context>
chip_gen: v7x
topology: tpu7x:2x2x1
jax: 0.10.0
libtpu: 0.0.40
codegen_flags: <defaults>
</compile_context>

<pallas_src>
import jax
import jax.numpy as jnp
from jax.experimental import pallas as pl
from jax.experimental.pallas import tpu as pltpu

_LANE = 128
_TARGET_BLOCK_BYTES = 4 * 1024 * 1024   # ~4 MiB blocks (v6e/v7x copy roofline)
_SINGLE_BLOCK_BYTES = 256 * 1024        # below this, one block (step overhead dominates)
_MIN_BLOCKS = 4                         # keep pipeline depth / v7x 2-TC sharding
_VMEM_LIMIT_BYTES = 32 * 1024 * 1024    # 2 specs x 2 bufs x 4 MiB = 16 MiB << 32 MiB


def _identity_kernel(x_ref, o_ref):
    # Pass-through on the current sublane-packed, lane-dense VMEM tile.
    # Concrete backbones replace this body with their conv/matmul compute.
    o_ref[...] = x_ref[...]


def _dma_identity_kernel(x_hbm, o_hbm, sem):
    # Ragged fallback: whole-array HBM->HBM DMA, no VMEM staging, no pad copies.
    cp = pltpu.make_async_copy(x_hbm, o_hbm, sem)
    cp.start()
    cp.wait()


def _packed_sublanes(dtype) -> int:
    """Packed vreg tile height for the dtype: 8 (f32) / 16 (bf16) / 32 (int8)."""
    itemsize = jnp.dtype(dtype).itemsize
    return 8 * max(1, 4 // itemsize)


def _pick_factorization(total: int, packed: int):
    """(rows, lanes): lanes a multiple of 128 (capped at 512), rows preferably
    a multiple of the dtype's packed sublane count.  None if total % 128 != 0."""
    if total % _LANE != 0:
        return None
    fallback = None
    for lanes in (_LANE, 2 * _LANE, 4 * _LANE):
        if total % lanes:
            continue
        rows = total // lanes
        if rows % packed == 0:
            return rows, lanes
        if fallback is None:
            fallback = (rows, lanes)
    return fallback


@jax.jit
def base_backbone_forward(x: jax.Array) -> jax.Array:
    """Pallas-backed forward of BaseBackbone (identity pass-through).

    x: NCHW array. Returns an array of identical shape/dtype.
    """
    orig_shape = x.shape
    total = x.size
    itemsize = jnp.dtype(x.dtype).itemsize
    packed = _packed_sublanes(x.dtype)
    x_flat = x.reshape(-1)

    fact = _pick_factorization(total, packed)
    if fact is None:
        # Element count not a multiple of 128: single HBM->HBM DMA identity,
        # avoiding any padded copy / output slice round trips.
        out_flat = pl.pallas_call(
            _dma_identity_kernel,
            out_shape=jax.ShapeDtypeStruct((total,), x.dtype),
            in_specs=[pl.BlockSpec(memory_space=pl.ANY)],
            out_specs=pl.BlockSpec(memory_space=pl.ANY),
            scratch_shapes=[pltpu.SemaphoreType.DMA],
        )(x_flat)
        return out_flat.reshape(orig_shape)

    rows, lanes = fact
    x2d = x_flat.reshape(rows, lanes)
    total_bytes = total * itemsize
    row_bytes = lanes * itemsize

    if total_bytes <= _SINGLE_BLOCK_BYTES:
        # Tiny slab (e.g. the (2,4,16,16) example -> (16,128)): one block,
        # zero per-step overhead; pipelining cannot help at this size.
        block_rows = rows
    else:
        # ~4 MiB blocks, rows a multiple of the packed sublane count, and at
        # least _MIN_BLOCKS blocks so the pipeline has depth and the row axis
        # can shard across v7x's two TensorCores.
        target_rows = max(packed, (_TARGET_BLOCK_BYTES // row_bytes) // packed * packed)
        cap_rows = max(packed, (rows // _MIN_BLOCKS) // packed * packed)
        block_rows = min(rows, target_rows, cap_rows)
    grid = (pl.cdiv(rows, block_rows),)

    out2d = pl.pallas_call(
        _identity_kernel,
        out_shape=jax.ShapeDtypeStruct((rows, lanes), x.dtype),
        grid=grid,
        in_specs=[pl.BlockSpec((block_rows, lanes), lambda i: (i, 0))],
        out_specs=pl.BlockSpec((block_rows, lanes), lambda i: (i, 0)),
        compiler_params=pltpu.CompilerParams(
            dimension_semantics=("parallel",),
            vmem_limit_bytes=_VMEM_LIMIT_BYTES,
        ),
        cost_estimate=pl.CostEstimate(
            flops=0,
            transcendentals=0,
            bytes_accessed=2 * total_bytes,
        ),
    )(x2d)
    return out2d.reshape(orig_shape)


if __name__ == "__main__":
    key = jax.random.PRNGKey(0)
    # Small NCHW input consistent with a backbone's expected image-like input.
    x = jax.random.normal(key, (2, 4, 16, 16), dtype=jnp.float32)

    y = base_backbone_forward(x)
    jax.block_until_ready(y)

    # Identity semantics check (pass-through base class).
    assert y.shape == x.shape and y.dtype == x.dtype
    assert bool(jnp.allclose(y, x))

    print("KERNEL_OK")
</pallas_src>

<mosaic_0001>
module attributes {stable_mosaic.version = 11 : i64} {
  func.func @_identity_kernel(%arg0: i32, %arg1: memref<16x128xf32, #tpu.memory_space<vmem>>, %arg2: memref<16x128xf32, #tpu.memory_space<vmem>>) attributes {dimension_semantics = [#tpu.dimension_semantics<parallel>], iteration_bounds = array<i64: 1>, scalar_prefetch = 0 : i64, scratch_operands = 0 : i64, tpu.core_type = #tpu.core_type<tc>, window_params = [{transform_indices = @transform_0, window_bounds = array<i64: 16, 128>}, {transform_indices = @transform_1, window_bounds = array<i64: 16, 128>}]} {
    %c0 = arith.constant 0 : index
    %c0_0 = arith.constant 0 : index
    %0 = vector.load %arg1[%c0, %c0_0] : memref<16x128xf32, #tpu.memory_space<vmem>>, vector<16x128xf32>
    %c0_1 = arith.constant 0 : index
    %c0_2 = arith.constant 0 : index
    %1 = vector.load %arg2[%c0_1, %c0_2] : memref<16x128xf32, #tpu.memory_space<vmem>>, vector<16x128xf32>
    tpu.vector_store %arg2[%c0_1, %c0_2], %0 {strides = array<i32>} : memref<16x128xf32, #tpu.memory_space<vmem>>, vector<16x128xf32>,
    return
  }
  func.func @transform_0(%arg0: i32) -> (i32, i32) {
    %c0_i32 = arith.constant 0 : i32
    %c0_i32_0 = arith.constant 0 : i32
    return %arg0, %c0_i32 : i32, i32
  }
  func.func @transform_1(%arg0: i32) -> (i32, i32) {
    %c0_i32 = arith.constant 0 : i32
    %c0_i32_0 = arith.constant 0 : i32
    return %arg0, %c0_i32 : i32, i32
  }
}

</mosaic_0001>

<llo_original>
// kernel: base_backbone_forward.1
$region0: #{base_backbone_forward.1}
  #allocation0 [shape = 'u32[]', space=smem, size = 0x4, offset = 0x4, fixed_abs, tag = 'smem constant byte address 0x4 - core index']
  #allocation1 [shape = 'u32[144,128]{1,0:T(1,128)}', space=vmem, size = 0x12000, scoped, tag = 'internal scratch']
  %s0 = inlined_call_operand.vmem [shape: f32[16,128], index: 0, kind: input, shape index: {}]
  %s1 = inlined_call_operand.vmem [shape: f32[16,128], index: 1, kind: output, shape index: {}]
  %s2 = sld [smem:[#allocation0]]
  $region14: #{base_backbone_forward.1} parent=0
    _
  %s4 = ssub.s32 1, %s2
  %s5 = scalar_select 0, %s4, %s2
  // Predicated region
  $region2: #{base_backbone_forward.1} parent=0 // pred_check
    _
  $region3: #{base_backbone_forward.1} parent=0 // pred_check_branch
    %7 = sbr.rel (0) target = $region5
  $region4: #{base_backbone_forward.1} parent=0 // pred_region
    _
  $region5: #{base_backbone_forward.1} parent=0 // pred_fallthru
    _
  %v8 = vld [vmem:[%s0] sm:$0xff]
  %v9 = vld [vmem:[%s0 + $0x8] sm:$0xff]
  %10 = vst [vmem:[%s1] sm:$0xff] %v8
  %11 = vst [vmem:[%s1 + $0x8] sm:$0xff] %v9
  // Predicated region
  $region6: #{base_backbone_forward.1} parent=0 // pred_check
    _
  $region7: #{base_backbone_forward.1} parent=0 // pred_check_branch
    %13 = sbr.rel (0) target = $region9
  $region8: #{base_backbone_forward.1} parent=0 // pred_region
    _
  $region9: #{base_backbone_forward.1} parent=0 // pred_fallthru
    _
  // Predicated region
  $region10: #{base_backbone_forward.1} parent=0 // pred_check
    _
  $region11: #{base_backbone_forward.1} parent=0 // pred_check_branch
    %15 = sbr.rel (0) target = $region13
  $region12: #{base_backbone_forward.1} parent=0 // pred_region
    _
  $region13: #{base_backbone_forward.1} parent=0 // pred_fallthru
    _

</llo_original>
